<compile_context>
chip_gen: v5e
topology: v5e:2x2
jax: 0.10.0
libtpu: 0.0.40
codegen_flags: <defaults>
</compile_context>

<pallas_src>
import functools
import math

import jax
import jax.numpy as jnp
import numpy as np
from jax.experimental import pallas as pl
from jax.experimental.pallas import tpu as pltpu

SAMPLE_RATIO = 0.1
FILTER_DEPTH = 1e-8
THETA = 0.02

_LANES = 128
_MAX_BLOCK_ROWS = 2048   # 4 streams * 2048 * 128 * 4B = 4 MiB per buffer


def _ranking_loss_kernel(x_ref, out_ref, sl_ref, cl_ref, ss_ref, cs_ref, *,
                         theta, filter_depth):
    i = pl.program_id(0)

    @pl.when(i == 0)
    def _():
        sl_ref[...] = jnp.zeros_like(sl_ref)
        cl_ref[...] = jnp.zeros_like(cl_ref)
        ss_ref[...] = jnp.zeros_like(ss_ref)
        cs_ref[...] = jnp.zeros_like(cs_ref)

    za = x_ref[0]   # (block_rows, 128) GT depth at A
    zb = x_ref[1]   # GT depth at B
    pa = x_ref[2]   # pred depth at A
    pb = x_ref[3]   # pred depth at B

    # mask_ignore: pairs where at least one GT depth passes the filter.
    # Padded / invalid pairs were zeroed in the wrapper, so they fail this
    # test automatically (no separate validity stream needed).
    keep = (za > filter_depth) | (zb > filter_depth)

    # Multiply-compare instead of za/zb, zb/za: no EUP divides, no inf/nan.
    one_theta = 1.0 + theta
    target = jnp.where(za > one_theta * zb, 1.0,
                       jnp.where(zb > one_theta * za, -1.0, 0.0))

    pred_diff = pa - pb
    nz_mask = keep & (target != 0.0)   # ranking (log) loss terms
    z_mask = keep & (target == 0.0)    # squared loss terms

    # Numerically stable softplus(-target * pred_diff) = log(1 + exp(-t*pd)).
    x = -target * pred_diff
    log_term = jnp.maximum(x, 0.0) + jnp.log(1.0 + jnp.exp(-jnp.abs(x)))

    # Lane-parallel accumulation: only reduce over sublanes each step; the
    # cross-lane reduction to a scalar happens once in the final step.
    sl_ref[...] += jnp.sum(jnp.where(nz_mask, log_term, 0.0),
                           axis=0, keepdims=True)
    cl_ref[...] += jnp.sum(nz_mask.astype(jnp.float32), axis=0, keepdims=True)
    ss_ref[...] += jnp.sum(jnp.where(z_mask, pred_diff * pred_diff, 0.0),
                           axis=0, keepdims=True)
    cs_ref[...] += jnp.sum(z_mask.astype(jnp.float32), axis=0, keepdims=True)

    @pl.when(i == pl.num_programs(0) - 1)
    def _():
        sl = jnp.sum(sl_ref[...], keepdims=True)
        cl = jnp.sum(cl_ref[...], keepdims=True)
        ss = jnp.sum(ss_ref[...], keepdims=True)
        cs = jnp.sum(cs_ref[...], keepdims=True)
        # mean(log terms) + mean(squared terms); 0/0 -> nan matches
        # torch.mean of an empty tensor.
        out_ref[...] = sl / cl + ss / cs


def _masked_pair_loss_pallas(streams, theta=THETA, filter_depth=FILTER_DEPTH):
    """streams: (4, N) float32 = [za, zb, pa, pb] flattened pair streams.

    Invalid / padded pairs must already have za == zb == 0.
    """
    n = streams.shape[1]
    rows_needed = max(1, (n + _LANES - 1) // _LANES)
    block_rows = min(_MAX_BLOCK_ROWS, ((rows_needed + 7) // 8) * 8)
    block = block_rows * _LANES
    n_pad = ((n + block - 1) // block) * block

    x = jnp.pad(streams.astype(jnp.float32), ((0, 0), (0, n_pad - n)))
    x = x.reshape(4, n_pad // _LANES, _LANES)
    rows = n_pad // _LANES
    grid = (rows // block_rows,)

    out = pl.pallas_call(
        functools.partial(_ranking_loss_kernel, theta=theta,
                          filter_depth=filter_depth),
        out_shape=jax.ShapeDtypeStruct((1, 1), jnp.float32),
        grid_spec=pltpu.PrefetchScalarGridSpec(
            num_scalar_prefetch=0,
            grid=grid,
            in_specs=[pl.BlockSpec((4, block_rows, _LANES),
                                   lambda i: (0, i, 0))],
            out_specs=pl.BlockSpec((1, 1), lambda i: (0, 0)),
            scratch_shapes=[pltpu.VMEM((1, _LANES), jnp.float32)] * 4,
        ),
        compiler_params=pltpu.CompilerParams(
            dimension_semantics=("arbitrary",),
            vmem_limit_bytes=32 * 1024 * 1024,
        ),
    )(x)
    return out[0, 0]


def _pair_bound(chw, sample_ratio):
    """Static bound on the number of sampled pairs (mean + 6 sigma)."""
    mean = sample_ratio * chw
    sigma = math.sqrt(chw * sample_ratio * (1.0 - sample_ratio))
    return int(min(chw, math.ceil(mean + 6.0 * sigma) + 8))


def ranking_loss(pred_depth, gt_depth, key,
                 sample_ratio=SAMPLE_RATIO, filter_depth=FILTER_DEPTH,
                 theta=THETA):
    """Forward pass of Ranking_Loss.  pred_depth / gt_depth: (B, C, H, W)."""
    B, C, H, W = gt_depth.shape
    chw = C * H * W
    k_mask, k_perm = jax.random.split(key)

    # mask_A: Bernoulli(sample_ratio) over (C, H, W); mask_B: random shuffle.
    u = jax.random.uniform(k_mask, (chw,), dtype=jnp.float32)
    mask_a = u >= (1.0 - sample_ratio)
    perm = jax.random.permutation(k_perm, chw)
    mask_b = mask_a[perm]

    # Fixed-size replacement for dynamic boolean gather: sorted True indices
    # (padded with 0), bounded at kmax ~ 1.5 * sample_ratio * chw instead of
    # chw, plus a validity count.  Pairing semantics are identical: the i-th
    # True of mask_A pairs with the i-th True of mask_B, per batch.
    kmax = _pair_bound(chw, sample_ratio)
    idx_a = jnp.nonzero(mask_a, size=kmax, fill_value=0)[0]
    idx_b = jnp.nonzero(mask_b, size=kmax, fill_value=0)[0]
    k_true = jnp.sum(mask_a.astype(jnp.int32))
    valid_row = jnp.arange(kmax) < k_true

    d_flat = gt_depth.reshape(B, chw).astype(jnp.float32)
    p_flat = pred_depth.reshape(B, chw).astype(jnp.float32)

    # One gather for all four streams.
    dp = jnp.stack([d_flat, p_flat])            # (2, B, chw)
    idx = jnp.concatenate([idx_a, idx_b])       # (2*kmax,)
    g = jnp.take(dp, idx, axis=2)               # (2, B, 2*kmax)
    za, zb = g[0, :, :kmax], g[0, :, kmax:]
    pa, pb = g[1, :, :kmax], g[1, :, kmax:]

    # Zero GT depths of padded (invalid) pairs so the kernel's filter-depth
    # test rejects them; removes the need for a validity stream.
    vz = valid_row[None, :]
    za = jnp.where(vz, za, 0.0)
    zb = jnp.where(vz, zb, 0.0)

    streams = jnp.stack([za, zb, pa, pb]).reshape(4, B * kmax)
    return _masked_pair_loss_pallas(streams, theta=theta,
                                    filter_depth=filter_depth)


def _reference_loss(za, zb, pa, pb, valid,
                    theta=THETA, filter_depth=FILTER_DEPTH):
    """Pure-JAX reference of the original (PyTorch) math, for a sanity check."""
    keep = valid & ((za > filter_depth) | (zb > filter_depth))
    flag1 = za / zb
    flag2 = zb / za
    target = jnp.where(flag1 > 1.0 + theta, 1.0,
                       jnp.where(flag2 > 1.0 + theta, -1.0, 0.0))
    pd = pa - pb
    nz = keep & (target != 0.0)
    z = keep & (target == 0.0)
    log_loss = (jnp.sum(jnp.where(nz, jnp.log(1.0 + jnp.exp(-target * pd)), 0.0))
                / jnp.sum(nz.astype(jnp.float32)))
    sq_loss = (jnp.sum(jnp.where(z, pd * pd, 0.0))
               / jnp.sum(z.astype(jnp.float32)))
    return log_loss + sq_loss


if __name__ == "__main__":
    key = jax.random.PRNGKey(0)
    k_depth, k_pred, k_loss = jax.random.split(key, 3)

    B, C, H, W = 2, 4, 16, 16
    # Quantized positive GT depths (ties -> some target==0 pairs exist).
    gt_depth = jnp.round(jax.random.uniform(k_depth, (B, C, H, W),
                                            dtype=jnp.float32) * 8.0) / 4.0
    pred_depth = jax.random.normal(k_pred, (B, C, H, W), dtype=jnp.float32)

    loss = ranking_loss(pred_depth, gt_depth, k_loss)
    loss = jax.block_until_ready(loss)

    # Cross-check kernel math against a pure-JAX reference built from the same
    # sampled pairs (re-derive them with the same key).
    chw = C * H * W
    k_mask, k_perm = jax.random.split(k_loss)
    u = jax.random.uniform(k_mask, (chw,), dtype=jnp.float32)
    mask_a = u >= (1.0 - SAMPLE_RATIO)
    perm = jax.random.permutation(k_perm, chw)
    mask_b = mask_a[perm]
    kmax = _pair_bound(chw, SAMPLE_RATIO)
    idx_a = jnp.nonzero(mask_a, size=kmax, fill_value=0)[0]
    idx_b = jnp.nonzero(mask_b, size=kmax, fill_value=0)[0]
    k_true = jnp.sum(mask_a.astype(jnp.int32))
    valid = jnp.broadcast_to((jnp.arange(kmax) < k_true)[None, :], (B, kmax))
    d_flat = gt_depth.reshape(B, chw)
    p_flat = pred_depth.reshape(B, chw)
    ref = _reference_loss(jnp.take(d_flat, idx_a, axis=1),
                          jnp.take(d_flat, idx_b, axis=1),
                          jnp.take(p_flat, idx_a, axis=1),
                          jnp.take(p_flat, idx_b, axis=1),
                          valid)
    np.testing.assert_allclose(np.asarray(loss), np.asarray(ref),
                               rtol=1e-5, atol=1e-5)

    print("KERNEL_OK")
</pallas_src>

<mosaic_0001>
module attributes {stable_mosaic.version = 11 : i64} {
  func.func @_ranking_loss_kernel(%arg0: i32, %arg1: memref<4x8x128xf32, #tpu.memory_space<vmem>>, %arg2: memref<1x1xf32, #tpu.memory_space<vmem>>, %arg3: memref<1x128xf32, #tpu.memory_space<vmem>>, %arg4: memref<1x128xf32, #tpu.memory_space<vmem>>, %arg5: memref<1x128xf32, #tpu.memory_space<vmem>>, %arg6: memref<1x128xf32, #tpu.memory_space<vmem>>) attributes {dimension_semantics = [#tpu.dimension_semantics<arbitrary>], iteration_bounds = array<i64: 1>, scalar_prefetch = 0 : i64, scratch_operands = 4 : i64, tpu.core_type = #tpu.core_type<tc>, window_params = [{transform_indices = @transform_0, window_bounds = array<i64: 4, 8, 128>}, {pipeline_mode = #tpu.pipeline_mode<synchronous>, transform_indices = @transform_1, window_bounds = array<i64: 1, 1>}]} {
    %c0_i32 = arith.constant 0 : i32
    %0 = arith.cmpi eq, %arg0, %c0_i32 : i32
    %1 = arith.extui %0 : i1 to i32
    %c0_i32_0 = arith.constant 0 : i32
    %2 = arith.cmpi ne, %1, %c0_i32_0 : i32
    scf.if %2 {
      %cst_45 = arith.constant 0.000000e+00 : f32
      %79 = vector.broadcast %cst_45 : f32 to vector<1x128xf32>
      %c0_46 = arith.constant 0 : index
      %c0_47 = arith.constant 0 : index
      %80 = vector.load %arg3[%c0_46, %c0_47] : memref<1x128xf32, #tpu.memory_space<vmem>>, vector<1x128xf32>
      tpu.vector_store %arg3[%c0_46, %c0_47], %79 {strides = array<i32>} : memref<1x128xf32, #tpu.memory_space<vmem>>, vector<1x128xf32>,
      %cst_48 = arith.constant 0.000000e+00 : f32
      %81 = vector.broadcast %cst_48 : f32 to vector<1x128xf32>
      %c0_49 = arith.constant 0 : index
      %c0_50 = arith.constant 0 : index
      %82 = vector.load %arg4[%c0_49, %c0_50] : memref<1x128xf32, #tpu.memory_space<vmem>>, vector<1x128xf32>
      tpu.vector_store %arg4[%c0_49, %c0_50], %81 {strides = array<i32>} : memref<1x128xf32, #tpu.memory_space<vmem>>, vector<1x128xf32>,
      %cst_51 = arith.constant 0.000000e+00 : f32
      %83 = vector.broadcast %cst_51 : f32 to vector<1x128xf32>
      %c0_52 = arith.constant 0 : index
      %c0_53 = arith.constant 0 : index
      %84 = vector.load %arg5[%c0_52, %c0_53] : memref<1x128xf32, #tpu.memory_space<vmem>>, vector<1x128xf32>
      tpu.vector_store %arg5[%c0_52, %c0_53], %83 {strides = array<i32>} : memref<1x128xf32, #tpu.memory_space<vmem>>, vector<1x128xf32>,
      %cst_54 = arith.constant 0.000000e+00 : f32
      %85 = vector.broadcast %cst_54 : f32 to vector<1x128xf32>
      %c0_55 = arith.constant 0 : index
      %c0_56 = arith.constant 0 : index
      %86 = vector.load %arg6[%c0_55, %c0_56] : memref<1x128xf32, #tpu.memory_space<vmem>>, vector<1x128xf32>
      tpu.vector_store %arg6[%c0_55, %c0_56], %85 {strides = array<i32>} : memref<1x128xf32, #tpu.memory_space<vmem>>, vector<1x128xf32>,
    } else {
    }
    %c0 = arith.constant 0 : index
    %c0_1 = arith.constant 0 : index
    %c0_2 = arith.constant 0 : index
    %3 = vector.load %arg1[%c0, %c0_1, %c0_2] : memref<4x8x128xf32, #tpu.memory_space<vmem>>, vector<1x8x128xf32>
    %4 = vector.shape_cast %3 : vector<1x8x128xf32> to vector<8x128xf32>
    %c1 = arith.constant 1 : index
    %c0_3 = arith.constant 0 : index
    %c0_4 = arith.constant 0 : index
    %5 = vector.load %arg1[%c1, %c0_3, %c0_4] : memref<4x8x128xf32, #tpu.memory_space<vmem>>, vector<1x8x128xf32>
    %6 = vector.shape_cast %5 : vector<1x8x128xf32> to vector<8x128xf32>
    %c2 = arith.constant 2 : index
    %c0_5 = arith.constant 0 : index
    %c0_6 = arith.constant 0 : index
    %7 = vector.load %arg1[%c2, %c0_5, %c0_6] : memref<4x8x128xf32, #tpu.memory_space<vmem>>, vector<1x8x128xf32>
    %8 = vector.shape_cast %7 : vector<1x8x128xf32> to vector<8x128xf32>
    %c3 = arith.constant 3 : index
    %c0_7 = arith.constant 0 : index
    %c0_8 = arith.constant 0 : index
    %9 = vector.load %arg1[%c3, %c0_7, %c0_8] : memref<4x8x128xf32, #tpu.memory_space<vmem>>, vector<1x8x128xf32>
    %10 = vector.shape_cast %9 : vector<1x8x128xf32> to vector<8x128xf32>
    %cst = arith.constant 9.99999993E-9 : f32
    %11 = vector.broadcast %cst : f32 to vector<8x128xf32>
    %12 = arith.cmpf ogt, %4, %11 : vector<8x128xf32>
    %cst_9 = arith.constant 9.99999993E-9 : f32
    %13 = vector.broadcast %cst_9 : f32 to vector<8x128xf32>
    %14 = arith.cmpf ogt, %6, %13 : vector<8x128xf32>
    %15 = arith.ori %12, %14 : vector<8x128xi1>
    %cst_10 = arith.constant 1.020000e+00 : f32
    %16 = vector.broadcast %cst_10 : f32 to vector<8x128xf32>
    %17 = arith.mulf %16, %6 : vector<8x128xf32>
    %18 = arith.cmpf ogt, %4, %17 : vector<8x128xf32>
    %cst_11 = arith.constant 1.020000e+00 : f32
    %19 = vector.broadcast %cst_11 : f32 to vector<8x128xf32>
    %20 = arith.mulf %19, %4 : vector<8x128xf32>
    %21 = arith.cmpf ogt, %6, %20 : vector<8x128xf32>
    %cst_12 = arith.constant -1.000000e+00 : f32
    %cst_13 = arith.constant 0.000000e+00 : f32
    %22 = vector.broadcast %cst_12 : f32 to vector<8x128xf32>
    %23 = vector.broadcast %cst_13 : f32 to vector<8x128xf32>
    %24 = arith.select %21, %22, %23 : vector<8x128xi1>, vector<8x128xf32>
    %cst_14 = arith.constant 1.000000e+00 : f32
    %25 = vector.broadcast %cst_14 : f32 to vector<8x128xf32>
    %26 = arith.select %18, %25, %24 : vector<8x128xi1>, vector<8x128xf32>
    %27 = arith.subf %8, %10 : vector<8x128xf32>
    %cst_15 = arith.constant 0.000000e+00 : f32
    %28 = vector.broadcast %cst_15 : f32 to vector<8x128xf32>
    %29 = arith.cmpf one, %26, %28 : vector<8x128xf32>
    %30 = arith.andi %15, %29 : vector<8x128xi1>
    %cst_16 = arith.constant 0.000000e+00 : f32
    %31 = vector.broadcast %cst_16 : f32 to vector<8x128xf32>
    %32 = arith.cmpf oeq, %26, %31 : vector<8x128xf32>
    %33 = arith.andi %15, %32 : vector<8x128xi1>
    %cst_17 = arith.constant 0.000000e+00 : f32
    %34 = vector.broadcast %cst_17 : f32 to vector<8x128xf32>
    %35 = arith.subf %34, %26 : vector<8x128xf32>
    %36 = arith.mulf %35, %27 : vector<8x128xf32>
    %cst_18 = arith.constant 0.000000e+00 : f32
    %37 = vector.broadcast %cst_18 : f32 to vector<8x128xf32>
    %38 = arith.maximumf %36, %37 : vector<8x128xf32>
    %39 = math.absf %36 : vector<8x128xf32>
    %cst_19 = arith.constant 0.000000e+00 : f32
    %40 = vector.broadcast %cst_19 : f32 to vector<8x128xf32>
    %41 = arith.subf %40, %39 : vector<8x128xf32>
    %42 = math.exp %41 : vector<8x128xf32>
    %cst_20 = arith.constant 1.000000e+00 : f32
    %43 = vector.broadcast %cst_20 : f32 to vector<8x128xf32>
    %44 = arith.addf %43, %42 : vector<8x128xf32>
    %45 = math.log %44 : vector<8x128xf32>
    %46 = arith.addf %38, %45 : vector<8x128xf32>
    %c0_21 = arith.constant 0 : index
    %c0_22 = arith.constant 0 : index
    %47 = vector.load %arg3[%c0_21, %c0_22] : memref<1x128xf32, #tpu.memory_space<vmem>>, vector<1x128xf32>
    %cst_23 = arith.constant 0.000000e+00 : f32
    %48 = vector.broadcast %cst_23 : f32 to vector<8x128xf32>
    %49 = arith.select %30, %46, %48 : vector<8x128xi1>, vector<8x128xf32>
    %cst_24 = arith.constant dense<0.000000e+00> : vector<128xf32>
    %50 = vector.multi_reduction <add>, %49, %cst_24 [0] : vector<8x128xf32> to vector<128xf32>
    %51 = vector.shape_cast %50 : vector<128xf32> to vector<1x128xf32>
    %52 = arith.addf %47, %51 : vector<1x128xf32>
    %c0_25 = arith.constant 0 : index
    %c0_26 = arith.constant 0 : index
    %53 = vector.load %arg3[%c0_25, %c0_26] : memref<1x128xf32, #tpu.memory_space<vmem>>, vector<1x128xf32>
    tpu.vector_store %arg3[%c0_25, %c0_26], %52 {strides = array<i32>} : memref<1x128xf32, #tpu.memory_space<vmem>>, vector<1x128xf32>,
    %c0_27 = arith.constant 0 : index
    %c0_28 = arith.constant 0 : index
    %54 = vector.load %arg4[%c0_27, %c0_28] : memref<1x128xf32, #tpu.memory_space<vmem>>, vector<1x128xf32>
    %55 = arith.extui %30 : vector<8x128xi1> to vector<8x128xi32>
    %56 = arith.sitofp %55 : vector<8x128xi32> to vector<8x128xf32>
    %cst_29 = arith.constant dense<0.000000e+00> : vector<128xf32>
    %57 = vector.multi_reduction <add>, %56, %cst_29 [0] : vector<8x128xf32> to vector<128xf32>
    %58 = vector.shape_cast %57 : vector<128xf32> to vector<1x128xf32>
    %59 = arith.addf %54, %58 : vector<1x128xf32>
    %c0_30 = arith.constant 0 : index
    %c0_31 = arith.constant 0 : index
    %60 = vector.load %arg4[%c0_30, %c0_31] : memref<1x128xf32, #tpu.memory_space<vmem>>, vector<1x128xf32>
    tpu.vector_store %arg4[%c0_30, %c0_31], %59 {strides = array<i32>} : memref<1x128xf32, #tpu.memory_space<vmem>>, vector<1x128xf32>,
    %c0_32 = arith.constant 0 : index
    %c0_33 = arith.constant 0 : index
    %61 = vector.load %arg5[%c0_32, %c0_33] : memref<1x128xf32, #tpu.memory_space<vmem>>, vector<1x128xf32>
    %62 = arith.mulf %27, %27 : vector<8x128xf32>
    %cst_34 = arith.constant 0.000000e+00 : f32
    %63 = vector.broadcast %cst_34 : f32 to vector<8x128xf32>
    %64 = arith.select %33, %62, %63 : vector<8x128xi1>, vector<8x128xf32>
    %cst_35 = arith.constant dense<0.000000e+00> : vector<128xf32>
    %65 = vector.multi_reduction <add>, %64, %cst_35 [0] : vector<8x128xf32> to vector<128xf32>
    %66 = vector.shape_cast %65 : vector<128xf32> to vector<1x128xf32>
    %67 = arith.addf %61, %66 : vector<1x128xf32>
    %c0_36 = arith.constant 0 : index
    %c0_37 = arith.constant 0 : index
    %68 = vector.load %arg5[%c0_36, %c0_37] : memref<1x128xf32, #tpu.memory_space<vmem>>, vector<1x128xf32>
    tpu.vector_store %arg5[%c0_36, %c0_37], %67 {strides = array<i32>} : memref<1x128xf32, #tpu.memory_space<vmem>>, vector<1x128xf32>,
    %c0_38 = arith.constant 0 : index
    %c0_39 = arith.constant 0 : index
    %69 = vector.load %arg6[%c0_38, %c0_39] : memref<1x128xf32, #tpu.memory_space<vmem>>, vector<1x128xf32>
    %70 = arith.extui %33 : vector<8x128xi1> to vector<8x128xi32>
    %71 = arith.sitofp %70 : vector<8x128xi32> to vector<8x128xf32>
    %cst_40 = arith.constant dense<0.000000e+00> : vector<128xf32>
    %72 = vector.multi_reduction <add>, %71, %cst_40 [0] : vector<8x128xf32> to vector<128xf32>
    %73 = vector.shape_cast %72 : vector<128xf32> to vector<1x128xf32>
    %74 = arith.addf %69, %73 : vector<1x128xf32>
    %c0_41 = arith.constant 0 : index
    %c0_42 = arith.constant 0 : index
    %75 = vector.load %arg6[%c0_41, %c0_42] : memref<1x128xf32, #tpu.memory_space<vmem>>, vector<1x128xf32>
    tpu.vector_store %arg6[%c0_41, %c0_42], %74 {strides = array<i32>} : memref<1x128xf32, #tpu.memory_space<vmem>>, vector<1x128xf32>,
    %c0_i32_43 = arith.constant 0 : i32
    %76 = arith.cmpi eq, %arg0, %c0_i32_43 : i32
    %77 = arith.extui %76 : i1 to i32
    %c0_i32_44 = arith.constant 0 : i32
    %78 = arith.cmpi ne, %77, %c0_i32_44 : i32
    scf.if %78 {
      %c0_45 = arith.constant 0 : index
      %c0_46 = arith.constant 0 : index
      %79 = vector.load %arg3[%c0_45, %c0_46] : memref<1x128xf32, #tpu.memory_space<vmem>>, vector<1x128xf32>
      %80 = vector.shape_cast %79 : vector<1x128xf32> to vector<1x1x128xf32>
      %cst_47 = arith.constant dense<0.000000e+00> : vector<1xf32>
      %81 = vector.multi_reduction <add>, %80, %cst_47 [1, 2] : vector<1x1x128xf32> to vector<1xf32>
      %82 = vector.shape_cast %81 : vector<1xf32> to vector<1x1x1xf32>
      %83 = vector.extract %82[0, 0, 0] : f32 from vector<1x1x1xf32>
      %84 = vector.broadcast %83 : f32 to vector<1x1xf32>
      %c0_48 = arith.constant 0 : index
      %c0_49 = arith.constant 0 : index
      %85 = vector.load %arg4[%c0_48, %c0_49] : memref<1x128xf32, #tpu.memory_space<vmem>>, vector<1x128xf32>
      %86 = vector.shape_cast %85 : vector<1x128xf32> to vector<1x1x128xf32>
      %cst_50 = arith.constant dense<0.000000e+00> : vector<1xf32>
      %87 = vector.multi_reduction <add>, %86, %cst_50 [1, 2] : vector<1x1x128xf32> to vector<1xf32>
      %88 = vector.shape_cast %87 : vector<1xf32> to vector<1x1x1xf32>
      %89 = vector.extract %88[0, 0, 0] : f32 from vector<1x1x1xf32>
      %90 = vector.broadcast %89 : f32 to vector<1x1xf32>
      %c0_51 = arith.constant 0 : index
      %c0_52 = arith.constant 0 : index
      %91 = vector.load %arg5[%c0_51, %c0_52] : memref<1x128xf32, #tpu.memory_space<vmem>>, vector<1x128xf32>
      %92 = vector.shape_cast %91 : vector<1x128xf32> to vector<1x1x128xf32>
      %cst_53 = arith.constant dense<0.000000e+00> : vector<1xf32>
      %93 = vector.multi_reduction <add>, %92, %cst_53 [1, 2] : vector<1x1x128xf32> to vector<1xf32>
      %94 = vector.shape_cast %93 : vector<1xf32> to vector<1x1x1xf32>
      %95 = vector.extract %94[0, 0, 0] : f32 from vector<1x1x1xf32>
      %96 = vector.broadcast %95 : f32 to vector<1x1xf32>
      %c0_54 = arith.constant 0 : index
      %c0_55 = arith.constant 0 : index
      %97 = vector.load %arg6[%c0_54, %c0_55] : memref<1x128xf32, #tpu.memory_space<vmem>>, vector<1x128xf32>
      %98 = vector.shape_cast %97 : vector<1x128xf32> to vector<1x1x128xf32>
      %cst_56 = arith.constant dense<0.000000e+00> : vector<1xf32>
      %99 = vector.multi_reduction <add>, %98, %cst_56 [1, 2] : vector<1x1x128xf32> to vector<1xf32>
      %100 = vector.shape_cast %99 : vector<1xf32> to vector<1x1x1xf32>
      %101 = vector.extract %100[0, 0, 0] : f32 from vector<1x1x1xf32>
      %102 = vector.broadcast %101 : f32 to vector<1x1xf32>
      %103 = arith.divf %84, %90 : vector<1x1xf32>
      %104 = arith.divf %96, %102 : vector<1x1xf32>
      %105 = arith.addf %103, %104 : vector<1x1xf32>
      %c0_57 = arith.constant 0 : index
      %c0_58 = arith.constant 0 : index
      %106 = vector.load %arg2[%c0_57, %c0_58] : memref<1x1xf32, #tpu.memory_space<vmem>>, vector<1x1xf32>
      tpu.vector_store %arg2[%c0_57, %c0_58], %105 {strides = array<i32>} : memref<1x1xf32, #tpu.memory_space<vmem>>, vector<1x1xf32>,
    } else {
    }
    return
  }
  func.func @transform_0(%arg0: i32) -> (i32, i32, i32) {
    %c0_i32 = arith.constant 0 : i32
    %c0_i32_0 = arith.constant 0 : i32
    %c0_i32_1 = arith.constant 0 : i32
    return %c0_i32, %arg0, %c0_i32_0 : i32, i32, i32
  }
  func.func @transform_1(%arg0: i32) -> (i32, i32) {
    %c0_i32 = arith.constant 0 : i32
    %c0_i32_0 = arith.constant 0 : i32
    %c0_i32_1 = arith.constant 0 : i32
    return %c0_i32, %c0_i32_0 : i32, i32
  }
}

</mosaic_0001>

<llo_original>
// kernel: tpu_custom_call.1
$region0: #{tpu_custom_call.1}
  #allocation0 [shape = 'u32[]', space=smem, size = 0x4, offset = 0x4, fixed_abs, tag = 'smem constant byte address 0x4 - core index']
  #allocation1 [shape = 'u32[72,128]{1,0:T(1,128)}', space=vmem, size = 0x9000, scoped, tag = 'internal scratch']
  #allocation2 [shape = 'f32[1,128]{1,0:T(1,128)}', space=vmem, size = 0x200, scoped, tag = 'scratch operand']
  #allocation3 [shape = 'f32[1,128]{1,0:T(1,128)}', space=vmem, size = 0x200, scoped, tag = 'scratch operand']
  #allocation4 [shape = 'f32[1,128]{1,0:T(1,128)}', space=vmem, size = 0x200, scoped, tag = 'scratch operand']
  #allocation5 [shape = 'f32[1,128]{1,0:T(1,128)}', space=vmem, size = 0x200, scoped, tag = 'scratch operand']
  %s0 = inlined_call_operand.hbm [shape: f32[4,8,128], index: 0, kind: input, shape index: {}]
  %s1 = inlined_call_operand.hbm [shape: f32[1,1], index: 1, kind: output, shape index: {}]
  %s2 = sld [smem:[#allocation0]]
  $region26: #{tpu_custom_call.1} parent=0
    _
  %s4 = ssub.s32 1, %s2
  %s5 = scalar_select 0, %s4, %s2
  $region1: #{tpu_custom_call.1} parent=0
    #allocation6 [shape = 'u8[16384]{0}', space=vmem, size = 0x4000, scoped, tag = 'input window, operand 0, single buffered']
    #allocation7 [shape = 's32[1]{0}', space=sflag, size = 0x4, scoped, tag = 'scoped memory for tpu_custom_call.1']
    #allocation8 [shape = 's32[1]{0}', space=sflag, size = 0x4, scoped, tag = 'scoped memory for tpu_custom_call.1']
    #allocation9 [shape = 'u8[512]{0}', space=vmem, size = 0x400, scoped, tag = 'output window, operand 0, single buffered']
    %6 = vsyncpa [#allocation7], 0
    %7 = vsyncpa [#allocation8], 0
    // Predicated region
    $region2: #{tpu_custom_call.1} parent=1 // pred_check
      _
    $region3: #{tpu_custom_call.1} parent=1 // pred_check_branch
      %9 = sbr.rel (0) target = $region5
    $region4: #{tpu_custom_call.1} parent=1 // pred_region
      %11 = vsyncadd [#allocation7], 0
      %s12 = sshll.u32 %s0, 4
      %s13 = int_to_ptr.hbm [resolvable:$true] %s12
      %s14 = sshll.u32 [#allocation6], 4
      %s15 = int_to_ptr.vmem [resolvable:$true] %s14
      %20 = dma.hbm_to_vmem [thread:$0]  %s13, 512, %s15, [#allocation7], 128, 128, 8
    $region5: #{tpu_custom_call.1} parent=1 // pred_fallthru
      _
    // Predicated region
    $region6: #{tpu_custom_call.1} parent=1 // pred_check
      _
    $region7: #{tpu_custom_call.1} parent=1 // pred_check_branch
      %22 = sbr.rel (0) target = $region9
    $region8: #{tpu_custom_call.1} parent=1 // pred_region
      %24 = dma.done [#allocation7], 512
    $region9: #{tpu_custom_call.1} parent=1 // pred_fallthru
      _
    %p25 = scmp.eq.s32.totalorder 0, 0
    // Predicated region
    $region10: #{tpu_custom_call.1} parent=1 // pred_check
      %p26 = pneg %p25
    $region11: #{tpu_custom_call.1} parent=1 // pred_check_branch
      %28 = sbr.rel (%p26) target = $region13
    $region12: #{tpu_custom_call.1} parent=1 // pred_region
      %29 = vst [vmem:[#allocation2] sm:$0x1] 0.0
      %30 = vst [vmem:[#allocation3] sm:$0x1] 0.0
      %31 = vst [vmem:[#allocation4] sm:$0x1] 0.0
      %32 = vst [vmem:[#allocation5] sm:$0x1] 0.0
    $region13: #{tpu_custom_call.1} parent=1 // pred_fallthru
      _
    %v33 = vld [vmem:[#allocation6] sm:$0xff]
    %s34 = scalar_lea.vmem [#allocation6], 8
    %v35 = vld [vmem:[%s34] sm:$0xff]
    %s36 = scalar_lea.vmem [#allocation6], 16
    %v37 = vld [vmem:[%s36] sm:$0xff]
    %s38 = scalar_lea.vmem [#allocation6], 24
    %v39 = vld [vmem:[%s38] sm:$0xff]
    %vm40 = vcmp.gt.f32.partialorder %v33, 1e-08
    %vm41 = vcmp.gt.f32.partialorder %v35, 1e-08
    %vm42 = vmor %vm40, %vm41
    %v43 = vmul.f32 %v35, 1.02
    %vm44 = vcmp.gt.f32.partialorder %v33, %v43
    %v45 = vmul.f32 %v33, 1.02
    %vm46 = vcmp.gt.f32.partialorder %v35, %v45
    %v47 = vsel %vm46, -1.0, 0.0
    %v48 = vsel %vm44, 1.0, %v47
    %v49 = vsub.f32 %v37, %v39
    %vm50 = vcmp.ne.f32.partialorder %v48, 0.0
    %vm51 = vmand %vm42, %vm50
    %vm52 = vcmp.eq.f32.partialorder %v48, 0.0
    %vm53 = vmand %vm42, %vm52
    %v54 = vsub.f32 0.0, %v48
    %v55 = vmul.f32 %v54, %v49
    %v56 = vmax.f32 %v55, 0.0
    %v57 = vand.u32 2147483647, %v55
    %v58 = vsub.f32 0.0, %v57
    %v59 = vmul.f32 %v58, 1.442695
    %v60 = vpow.pop %v59
    %v61 = vadd.f32 %v60, 1.0
    %v62 = vlog2.pop %v61
    %v63 = vmul.f32 %v62, 0.6931472
    %v64 = vadd.f32 %v56, %v63
    %v65 = vld [vmem:[#allocation2] sm:$0x1]
    %v66 = vsel %vm51, %v64, 0.0
    %v67 = vrot.slane %v66, 4
    %v68 = vadd.f32 %v66, %v67
    %v69 = vrot.slane %v68, 2
    %v70 = vadd.f32 %v68, %v69
    %v71 = vrot.slane %v70, 1
    %v72 = vadd.f32 %v70, %v71
    %v73 = vadd.f32 %v65, %v72
    %74 = vst [vmem:[#allocation2] sm:$0x1] %v73
    %v75 = vld [vmem:[#allocation3] sm:$0x1]
    %v76 = vsel %vm51, 1, 0
    %v77 = vcvt.s32.f32 %v76
    %v78 = vrot.slane %v77, 4
    %v79 = vadd.f32 %v77, %v78
    %v80 = vrot.slane %v79, 2
    %v81 = vadd.f32 %v79, %v80
    %v82 = vrot.slane %v81, 1
    %v83 = vadd.f32 %v81, %v82
    %v84 = vadd.f32 %v75, %v83
    %85 = vst [vmem:[#allocation3] sm:$0x1] %v84
    %v86 = vld [vmem:[#allocation4] sm:$0x1]
    %v87 = vmul.f32 %v49, %v49
    %v88 = vsel %vm53, %v87, 0.0
    %v89 = vrot.slane %v88, 4
    %v90 = vadd.f32 %v88, %v89
    %v91 = vrot.slane %v90, 2
    %v92 = vadd.f32 %v90, %v91
    %v93 = vrot.slane %v92, 1
    %v94 = vadd.f32 %v92, %v93
    %v95 = vadd.f32 %v86, %v94
    %96 = vst [vmem:[#allocation4] sm:$0x1] %v95
    %v97 = vld [vmem:[#allocation5] sm:$0x1]
    %v98 = vsel %vm53, 1, 0
    %v99 = vcvt.s32.f32 %v98
    %v100 = vrot.slane %v99, 4
    %v101 = vadd.f32 %v99, %v100
    %v102 = vrot.slane %v101, 2
    %v103 = vadd.f32 %v101, %v102
    %v104 = vrot.slane %v103, 1
    %v105 = vadd.f32 %v103, %v104
    %v106 = vadd.f32 %v97, %v105
    %107 = vst [vmem:[#allocation5] sm:$0x1] %v106
    // Predicated region
    $region14: #{tpu_custom_call.1} parent=1 // pred_check
      %p108 = pneg %p25
    $region15: #{tpu_custom_call.1} parent=1 // pred_check_branch
      %110 = sbr.rel (%p108) target = $region17
    $region16: #{tpu_custom_call.1} parent=1 // pred_region
      %v111 = vld [vmem:[#allocation2] sm:$0x1]
      %vm112 = vcmask 1040384
      %v113 = vsel %vm112, %v111, 0.0
      %114 = vadd.xlane.f32.xlu0 %v113
      %v115 = vpop.xlane.xlu0 %114
      %v116 = vrot.slane %v115, 4
      %v117 = vadd.f32 %v115, %v116
      %v118 = vrot.slane %v117, 2
      %v119 = vadd.f32 %v117, %v118
      %v120 = vrot.slane %v119, 1
      %v121 = vadd.f32 %v119, %v120
      %s122 = vtos %v121
      %v123 = vstv %s122
      %v124 = vld [vmem:[#allocation3] sm:$0x1]
      %v125 = vsel %vm112, %v124, 0.0
      %126 = vadd.xlane.f32.xlu0 %v125
      %v127 = vpop.xlane.xlu0 %126
      %v128 = vrot.slane %v127, 4
      %v129 = vadd.f32 %v127, %v128
      %v130 = vrot.slane %v129, 2
      %v131 = vadd.f32 %v129, %v130
      %v132 = vrot.slane %v131, 1
      %v133 = vadd.f32 %v131, %v132
      %s134 = vtos %v133
      %v135 = vstv %s134
      %v136 = vld [vmem:[#allocation4] sm:$0x1]
      %v137 = vsel %vm112, %v136, 0.0
      %138 = vadd.xlane.f32.xlu0 %v137
      %v139 = vpop.xlane.xlu0 %138
      %v140 = vrot.slane %v139, 4
      %v141 = vadd.f32 %v139, %v140
      %v142 = vrot.slane %v141, 2
      %v143 = vadd.f32 %v141, %v142
      %v144 = vrot.slane %v143, 1
      %v145 = vadd.f32 %v143, %v144
      %s146 = vtos %v145
      %v147 = vstv %s146
      %v148 = vld [vmem:[#allocation5] sm:$0x1]
      %v149 = vsel %vm112, %v148, 0.0
      %150 = vadd.xlane.f32.xlu0 %v149
      %v151 = vpop.xlane.xlu0 %150
      %v152 = vrot.slane %v151, 4
      %v153 = vadd.f32 %v151, %v152
      %v154 = vrot.slane %v153, 2
      %v155 = vadd.f32 %v153, %v154
      %v156 = vrot.slane %v155, 1
      %v157 = vadd.f32 %v155, %v156
      %s158 = vtos %v157
      %v159 = vstv %s158
      %v160 = vrcp.pop %v135
      %v161 = vmul.f32 %v135, %v160
      %v162 = vsub.f32 1.0, %v161
      %v163 = vmul.f32 %v160, %v162
      %v164 = vadd.f32 %v160, %v163
      %vm165 = vweird.f32 %v135
      %vm166 = vweird.f32 %v160
      %vm167 = vmor %vm165, %vm166
      %v168 = vsel %vm167, %v160, %v164
      %v169 = vand.u32 2147483647, %v135
      %vm170 = vcmp.eq.f32.partialorder %v169, 8.507059e+37
      %v171 = vand.u32 %v135, 2147483648
      %v172 = vor.u32 1.1754944e-38, %v171
      %v173 = vsel %vm170, %v172, %v168
      %v174 = vmul.f32 %v123, %v173
      %v175 = vrcp.pop %v159
      %v176 = vmul.f32 %v159, %v175
      %v177 = vsub.f32 1.0, %v176
      %v178 = vmul.f32 %v175, %v177
      %v179 = vadd.f32 %v175, %v178
      %vm180 = vweird.f32 %v159
      %vm181 = vweird.f32 %v175
      %vm182 = vmor %vm180, %vm181
      %v183 = vsel %vm182, %v175, %v179
      %v184 = vand.u32 2147483647, %v159
      %vm185 = vcmp.eq.f32.partialorder %v184, 8.507059e+37
      %v186 = vand.u32 %v159, 2147483648
      %v187 = vor.u32 1.1754944e-38, %v186
      %v188 = vsel %vm185, %v187, %v183
      %v189 = vmul.f32 %v147, %v188
      %v190 = vadd.f32 %v174, %v189
      %vm191 = vcmask 0
      %192 = vst.msk [vmem:[#allocation9] sm:$0x1] %vm191, %v190
    $region17: #{tpu_custom_call.1} parent=1 // pred_fallthru
      _
    // Predicated region
    $region18: #{tpu_custom_call.1} parent=1 // pred_check
      _
    $region19: #{tpu_custom_call.1} parent=1 // pred_check_branch
      %194 = sbr.rel (0) target = $region21
    $region20: #{tpu_custom_call.1} parent=1 // pred_region
      %196 = vsyncadd [#allocation8], 0
      %s198 = sshll.u32 [#allocation9], 4
      %s199 = int_to_ptr.vmem [resolvable:$true] %s198
      %s200 = sshll.u32 %s1, 4
      %s201 = int_to_ptr.hbm [resolvable:$true] %s200
      %203 = dma.vmem_to_hbm [thread:$0]  %s199, 16, %s201, [#allocation8]
    $region21: #{tpu_custom_call.1} parent=1 // pred_fallthru
      _
    // Predicated region
    $region22: #{tpu_custom_call.1} parent=1 // pred_check
      _
    $region23: #{tpu_custom_call.1} parent=1 // pred_check_branch
      %205 = sbr.rel (0) target = $region25
    $region24: #{tpu_custom_call.1} parent=1 // pred_region
      %207 = dma.done [#allocation8], 16
    $region25: #{tpu_custom_call.1} parent=1 // pred_fallthru
      _
    %208 = vsyncpa [#allocation7], 1
    %209 = vsyncpa [#allocation8], 1

</llo_original>
